<compile_context>
chip_gen: v7x
topology: tpu7x:2x2x1
jax: 0.10.0
libtpu: 0.0.40
codegen_flags: <defaults>
</compile_context>

<pallas_src>
import functools

import jax
import jax.numpy as jnp
from jax.experimental import pallas as pl
from jax.experimental.pallas import tpu as pltpu


def _round_up(x, m):
    return ((x + m - 1) // m) * m


def _tpu_vmem_capacity_bytes():
    try:
        info = pltpu.get_tpu_info()
        return int(getattr(info, "vmem_capacity_bytes", 64 * 1024 * 1024))
    except Exception:
        return 64 * 1024 * 1024  # conservative (v7x per-TC VMEM)


def _prototype_kernel(scale_ref, labels_ref, support_ref, pn_ref, *,
                      c_pad, inv_temperature):
    """One-shot prologue: normalized, (scale/temperature)-folded prototypes.

    Output is pre-transposed to (D, C_pad) so the main kernel's matmul is the
    canonical (M, K) @ (K, N) form.
    """
    eps = 1e-12

    labels = labels_ref[...]                                       # (1, S_pad) int32
    class_ids = jax.lax.broadcasted_iota(
        jnp.int32, (c_pad, labels.shape[1]), 0)                    # (C_pad, S_pad)
    onehot = (class_ids == labels).astype(support_ref.dtype)       # (C_pad, S_pad)

    # Per-class SUM of support rows (the /count of the mean is a positive
    # per-row scale and cancels under the L2 normalization below).
    protos = jnp.dot(onehot, support_ref[...],
                     preferred_element_type=jnp.float32)           # (C_pad, D) f32

    combined = scale_ref[0, 0] * inv_temperature                   # scale / temperature
    p_sq = jnp.sum(protos * protos, axis=1, keepdims=True)         # (C_pad, 1)
    inv_p = jax.lax.rsqrt(jnp.maximum(p_sq, eps * eps)) * combined

    # One-time XLU transpose, amortized over all Q tiles of the main kernel.
    pn_ref[...] = (protos * inv_p).T.astype(pn_ref.dtype)          # (D, C_pad)


def _cosine_sim_kernel(query_ref, pn_ref, out_ref, *, mm_dtype):
    """Q-tiled body: L2-normalize the query tile, matmul against resident pn."""
    eps = 1e-12

    q = query_ref[...].astype(jnp.float32)                         # (TQ, D)
    q_sq = jnp.sum(q * q, axis=1, keepdims=True)
    qn = (q * jax.lax.rsqrt(jnp.maximum(q_sq, eps * eps))).astype(mm_dtype)

    out_ref[...] = jnp.dot(qn, pn_ref[...],
                           preferred_element_type=jnp.float32).astype(out_ref.dtype)


def cosine_classifier(query_feat, support_feat, support_labels, scale,
                      num_classes, temperature=0.07):
    """query_feat [Q,D], support_feat [S,D], support_labels [S] int in [0, C)."""
    Q, D = query_feat.shape
    S, _ = support_feat.shape
    C = int(num_classes)

    LANE = 128

    # bf16 inputs keep bf16 MXU operands (f32 accumulation); otherwise f32.
    mm_dtype = jnp.bfloat16 if query_feat.dtype == jnp.bfloat16 else jnp.float32
    out_dtype = query_feat.dtype

    # Lane-dense class axis; support axis aligned to sublane packing (16 for bf16).
    sub_s = 16 if support_feat.dtype == jnp.bfloat16 else 8
    c_pad = _round_up(max(C, 1), LANE)
    s_pad = _round_up(S, sub_s)

    sf = support_feat
    labels = support_labels.astype(jnp.int32)
    if s_pad != S:
        sf = jnp.pad(sf, ((0, s_pad - S), (0, 0)))
        # Out-of-range label -> all-zero one-hot row -> prototype sums unchanged.
        labels = jnp.pad(labels, (0, s_pad - S), constant_values=c_pad)
    labels_2d = labels.reshape(1, s_pad)
    scale_2d = jnp.asarray(scale, jnp.float32).reshape(1, 1)

    # ---- prologue: build pn = (D, C_pad) normalized / folded prototypes ----
    pn = pl.pallas_call(
        functools.partial(_prototype_kernel, c_pad=c_pad,
                          inv_temperature=float(1.0 / temperature)),
        out_shape=jax.ShapeDtypeStruct((D, c_pad), mm_dtype),
        in_specs=[
            pl.BlockSpec(memory_space=pltpu.SMEM),            # scale (1,1)
            pl.BlockSpec((1, s_pad), lambda: (0, 0)),         # labels
            pl.BlockSpec((s_pad, D), lambda: (0, 0)),         # support
        ],
        out_specs=pl.BlockSpec((D, c_pad), lambda: (0, 0)),
    )(scale_2d, labels_2d, sf)

    # ---- main: Q-tiled cosine similarities against resident prototypes ----
    vmem_cap = _tpu_vmem_capacity_bytes()
    if vmem_cap >= 96 * 1024 * 1024:        # v5e / v6e: 128 MiB physical VMEM
        tq_cap, vmem_limit = 512, 64 * 1024 * 1024
    else:                                   # v7x: 64 MiB per TensorCore
        tq_cap, vmem_limit = 256, 48 * 1024 * 1024

    q_ceil = _round_up(max(Q, 1), 8)
    TQ = min(tq_cap, q_ceil)

    q_isz = jnp.dtype(query_feat.dtype).itemsize
    o_isz = jnp.dtype(out_dtype).itemsize
    p_isz = jnp.dtype(mm_dtype).itemsize

    def _footprint(tq):
        return (2 * tq * D * q_isz            # double-buffered query tiles
                + 2 * tq * c_pad * o_isz      # double-buffered output tiles
                + 2 * D * c_pad * p_isz       # resident pn (x2, conservative)
                + tq * D * 4 + tq * c_pad * 4)  # in-kernel f32 temporaries

    while TQ > 8 and _footprint(TQ) > (3 * vmem_limit) // 4:
        TQ = max(8, _round_up(TQ // 2, 8))

    grid = (pl.cdiv(Q, TQ),)   # no query padding: partial last block is masked

    out_padded = pl.pallas_call(
        functools.partial(_cosine_sim_kernel, mm_dtype=mm_dtype),
        out_shape=jax.ShapeDtypeStruct((Q, c_pad), out_dtype),
        grid=grid,
        in_specs=[
            pl.BlockSpec((TQ, D), lambda i: (i, 0)),          # query tile
            # Resident prototypes (constant index_map -> fetched once).
            # TODO(synk): single-buffering the invariant pn block (e.g. via
            # pipeline_mode) would halve its VMEM footprint on v7x.
            pl.BlockSpec((D, c_pad), lambda i: (0, 0)),
        ],
        out_specs=pl.BlockSpec((TQ, c_pad), lambda i: (i, 0)),
        compiler_params=pltpu.CompilerParams(
            # Q tiles are fully independent -> shard across TensorCores.
            dimension_semantics=("parallel",),
            vmem_limit_bytes=vmem_limit,
        ),
    )(query_feat, pn)

    return out_padded[:, :C]


def _reference(query_feat, support_feat, support_labels, scale,
               num_classes, temperature=0.07):
    onehot = jax.nn.one_hot(support_labels, num_classes, dtype=jnp.float32)  # (S, C)
    counts = onehot.sum(0)[:, None]
    protos = (onehot.T @ support_feat) / counts
    qn = query_feat / jnp.maximum(
        jnp.linalg.norm(query_feat, axis=1, keepdims=True), 1e-12)
    pn = protos / jnp.maximum(
        jnp.linalg.norm(protos, axis=1, keepdims=True), 1e-12)
    return scale * (qn @ pn.T) / temperature


if __name__ == "__main__":
    key = jax.random.PRNGKey(0)
    k1, k2, k3 = jax.random.split(key, 3)

    Q, S, D, C = 8, 16, 32, 4  # 8 queries, 16 supports, feat_dim 32, 4 classes
    query_feat = jax.random.normal(k1, (Q, D), dtype=jnp.float32)
    support_feat = jax.random.normal(k2, (S, D), dtype=jnp.float32)
    # every class present (so torch.unique order == 0..C-1), deterministic shuffle
    support_labels = jax.random.permutation(k3, jnp.arange(S, dtype=jnp.int32) % C)

    scale = jnp.float32(10.0)  # nn.Parameter(torch.tensor(10.0)) init
    temperature = 0.07

    out = cosine_classifier(query_feat, support_feat, support_labels, scale,
                            num_classes=C, temperature=temperature)
    out = jax.block_until_ready(out)

    ref = _reference(query_feat, support_feat, support_labels, scale,
                     num_classes=C, temperature=temperature)
    assert out.shape == (Q, C)
    assert jnp.allclose(out, ref, atol=1e-3, rtol=1e-3)

    print("KERNEL_OK")
</pallas_src>

<mosaic_0001>
module attributes {stable_mosaic.version = 11 : i64} {
  func.func @_prototype_kernel(%arg0: memref<1x1xf32, #tpu.memory_space<smem>>, %arg1: memref<1x16xi32, #tpu.memory_space<vmem>>, %arg2: memref<16x32xf32, #tpu.memory_space<vmem>>, %arg3: memref<32x128xf32, #tpu.memory_space<vmem>>) attributes {dimension_semantics = [], scalar_prefetch = 0 : i64, scratch_operands = 0 : i64, tpu.core_type = #tpu.core_type<tc>} {
    %c0 = arith.constant 0 : index
    %c0_0 = arith.constant 0 : index
    %0 = vector.load %arg1[%c0, %c0_0] : memref<1x16xi32, #tpu.memory_space<vmem>>, vector<1x16xi32>
    %1 = tpu.iota {dimensions = array<i32: 0>} : vector<128x16xi32>
    %2 = vector.broadcast %0 : vector<1x16xi32> to vector<128x16xi32>
    %3 = arith.cmpi eq, %1, %2 : vector<128x16xi32>
    %4 = arith.extui %3 : vector<128x16xi1> to vector<128x16xi32>
    %5 = arith.sitofp %4 : vector<128x16xi32> to vector<128x16xf32>
    %c0_1 = arith.constant 0 : index
    %c0_2 = arith.constant 0 : index
    %6 = vector.load %arg2[%c0_1, %c0_2] : memref<16x32xf32, #tpu.memory_space<vmem>>, vector<16x32xf32>
    %cst = arith.constant dense<0.000000e+00> : vector<128x32xf32>
    %7 = tpu.matmul %5, %6, %cst {dimension_numbers = #tpu.dot_dimension_numbers<[1], [0], [0], [1], [0, 0, 1, 1], [], []>} : vector<128x16xf32>, vector<16x32xf32>, vector<128x32xf32> -> vector<128x32xf32>
    %c0_3 = arith.constant 0 : index
    %c0_4 = arith.constant 0 : index
    %8 = memref.load %arg0[%c0_3, %c0_4] : memref<1x1xf32, #tpu.memory_space<smem>>
    %cst_5 = arith.constant 14.2857141 : f32
    %9 = arith.mulf %8, %cst_5 : f32
    %10 = arith.mulf %7, %7 : vector<128x32xf32>
    %cst_6 = arith.constant dense<0.000000e+00> : vector<128xf32>
    %11 = vector.multi_reduction <add>, %10, %cst_6 [1] : vector<128x32xf32> to vector<128xf32>
    %12 = vector.shape_cast %11 : vector<128xf32> to vector<128x1xf32>
    %cst_7 = arith.constant 1.000000e-24 : f32
    %13 = vector.broadcast %cst_7 : f32 to vector<128x1xf32>
    %14 = arith.maximumf %12, %13 : vector<128x1xf32>
    %15 = math.rsqrt %14 : vector<128x1xf32>
    %16 = vector.broadcast %9 : f32 to vector<128x1xf32>
    %17 = arith.mulf %15, %16 : vector<128x1xf32>
    %18 = vector.broadcast %17 : vector<128x1xf32> to vector<128x32xf32>
    %19 = arith.mulf %7, %18 : vector<128x32xf32>
    %20 = tpu.transpose %19, [1, 0] : vector<128x32xf32> -> vector<32x128xf32>
    %c0_8 = arith.constant 0 : index
    %c0_9 = arith.constant 0 : index
    %21 = vector.load %arg3[%c0_8, %c0_9] : memref<32x128xf32, #tpu.memory_space<vmem>>, vector<32x128xf32>
    tpu.vector_store %arg3[%c0_8, %c0_9], %20 {strides = array<i32>} : memref<32x128xf32, #tpu.memory_space<vmem>>, vector<32x128xf32>,
    return
  }
}

</mosaic_0001>

<llo_original>
// kernel: tpu_custom_call.1
$region0: #{tpu_custom_call.1}
  #allocation0 [shape = 'u32[]', space=smem, size = 0x4, offset = 0x4, fixed_abs, tag = 'smem constant byte address 0x4 - core index']
  #allocation1 [shape = 'u32[144,128]{1,0:T(1,128)}', space=vmem, size = 0x12000, scoped, tag = 'internal scratch']
  #allocation2 [shape = 'f32[1,1]{1,0:T(1,128)S(6)}', space=smem, size = 0x200, scoped, tag = 'scoped memory for tpu_custom_call.1']
  %s0 = inlined_call_operand.<no memory space> [shape: f32[1,1], index: 0, kind: input, shape index: {}]
  %s1 = inlined_call_operand.vmem [shape: s32[1,16], index: 1, kind: input, shape index: {}]
  %s2 = inlined_call_operand.hbm [shape: f32[16,32], index: 2, kind: input, shape index: {}]
  %s3 = inlined_call_operand.hbm [shape: f32[32,128], index: 3, kind: output, shape index: {}]
  %s4 = sld [smem:[#allocation0]]
  $region26: #{tpu_custom_call.1} parent=0
    _
  %s6 = ssub.s32 1, %s4
  %s7 = scalar_select 0, %s6, %s4
  %8 = sst [smem:[#allocation2]] %s0
  $region1: #{tpu_custom_call.1} parent=0
    #allocation3 [shape = 'u8[8192]{0}', space=vmem, size = 0x2000, scoped, tag = 'input window, operand 2, single buffered']
    #allocation4 [shape = 's32[1]{0}', space=sflag, size = 0x4, scoped, tag = 'scoped memory for tpu_custom_call.1']
    #allocation5 [shape = 's32[1]{0}', space=sflag, size = 0x4, scoped, tag = 'scoped memory for tpu_custom_call.1']
    #allocation6 [shape = 'u8[16384]{0}', space=vmem, size = 0x4000, scoped, tag = 'output window, operand 0, single buffered']
    %9 = vsyncpa [#allocation4], 0
    %10 = vsyncpa [#allocation5], 0
    // Predicated region
    $region2: #{tpu_custom_call.1} parent=1 // pred_check
      _
    $region3: #{tpu_custom_call.1} parent=1 // pred_check_branch
      %12 = sbr.rel (0) target = $region5
    $region4: #{tpu_custom_call.1} parent=1 // pred_region
      _
    $region5: #{tpu_custom_call.1} parent=1 // pred_fallthru
      _
    // Predicated region
    $region6: #{tpu_custom_call.1} parent=1 // pred_check
      _
    $region7: #{tpu_custom_call.1} parent=1 // pred_check_branch
      %14 = sbr.rel (0) target = $region9
    $region8: #{tpu_custom_call.1} parent=1 // pred_region
      _
    $region9: #{tpu_custom_call.1} parent=1 // pred_fallthru
      _
    // Predicated region
    $region10: #{tpu_custom_call.1} parent=1 // pred_check
      _
    $region11: #{tpu_custom_call.1} parent=1 // pred_check_branch
      %16 = sbr.rel (0) target = $region13
    $region12: #{tpu_custom_call.1} parent=1 // pred_region
      %s18 = ssub.s32 256, 256
      %19 = vsyncadd [#allocation4], %s18
      %s20 = sshll.u32 [#allocation3], 4
      %s21 = int_to_ptr.vmem [resolvable:$true] %s20
      %26 = dma.hbm_to_vmem [thread:$0]  %s2, 256, %s21, [#allocation4], 128, 128, 8
    $region13: #{tpu_custom_call.1} parent=1 // pred_fallthru
      _
    // Predicated region
    $region14: #{tpu_custom_call.1} parent=1 // pred_check
      _
    $region15: #{tpu_custom_call.1} parent=1 // pred_check_branch
      %28 = sbr.rel (0) target = $region17
    $region16: #{tpu_custom_call.1} parent=1 // pred_region
      %29 = dma.done [#allocation4], 256
    $region17: #{tpu_custom_call.1} parent=1 // pred_fallthru
      _
    %v30 = vld [vmem:[%s1] sm:$0x1]
    %v31 = vlaneseq
    %v32 = vshrl.u32 %v31, 7
    %v33 = vadd.s32 %v32, 8
    %v34 = vadd.s32 %v32, 16
    %v35 = vadd.s32 %v32, 24
    %v36 = vadd.s32 %v32, 32
    %v37 = vadd.s32 %v32, 40
    %v38 = vadd.s32 %v32, 48
    %v39 = vadd.s32 %v32, 56
    %v40 = vadd.s32 %v32, 64
    %v41 = vadd.s32 %v32, 72
    %v42 = vadd.s32 %v32, 80
    %v43 = vadd.s32 %v32, 88
    %v44 = vadd.s32 %v32, 96
    %v45 = vadd.s32 %v32, 104
    %v46 = vadd.s32 %v32, 112
    %v47 = vadd.s32 %v32, 120
    %v48 = vlaneseq
    %v49 = vshrl.u32 %v48, 7
    %v50 = vsub.s32 0, %v49
    %v51 = vrot.slane %v30, %v50
    %vm52 = vcmp.eq.s32.totalorder %v32, %v51
    %vm53 = vcmp.eq.s32.totalorder %v33, %v51
    %vm54 = vcmp.eq.s32.totalorder %v34, %v51
    %vm55 = vcmp.eq.s32.totalorder %v35, %v51
    %vm56 = vcmp.eq.s32.totalorder %v36, %v51
    %vm57 = vcmp.eq.s32.totalorder %v37, %v51
    %vm58 = vcmp.eq.s32.totalorder %v38, %v51
    %vm59 = vcmp.eq.s32.totalorder %v39, %v51
    %vm60 = vcmp.eq.s32.totalorder %v40, %v51
    %vm61 = vcmp.eq.s32.totalorder %v41, %v51
    %vm62 = vcmp.eq.s32.totalorder %v42, %v51
    %vm63 = vcmp.eq.s32.totalorder %v43, %v51
    %vm64 = vcmp.eq.s32.totalorder %v44, %v51
    %vm65 = vcmp.eq.s32.totalorder %v45, %v51
    %vm66 = vcmp.eq.s32.totalorder %v46, %v51
    %vm67 = vcmp.eq.s32.totalorder %v47, %v51
    %v68 = vsel %vm52, 1, 0
    %v69 = vsel %vm53, 1, 0
    %v70 = vsel %vm54, 1, 0
    %v71 = vsel %vm55, 1, 0
    %v72 = vsel %vm56, 1, 0
    %v73 = vsel %vm57, 1, 0
    %v74 = vsel %vm58, 1, 0
    %v75 = vsel %vm59, 1, 0
    %v76 = vsel %vm60, 1, 0
    %v77 = vsel %vm61, 1, 0
    %v78 = vsel %vm62, 1, 0
    %v79 = vsel %vm63, 1, 0
    %v80 = vsel %vm64, 1, 0
    %v81 = vsel %vm65, 1, 0
    %v82 = vsel %vm66, 1, 0
    %v83 = vsel %vm67, 1, 0
    %v84 = vcvt.s32.f32 %v68
    %v85 = vcvt.s32.f32 %v69
    %v86 = vcvt.s32.f32 %v70
    %v87 = vcvt.s32.f32 %v71
    %v88 = vcvt.s32.f32 %v72
    %v89 = vcvt.s32.f32 %v73
    %v90 = vcvt.s32.f32 %v74
    %v91 = vcvt.s32.f32 %v75
    %v92 = vcvt.s32.f32 %v76
    %v93 = vcvt.s32.f32 %v77
    %v94 = vcvt.s32.f32 %v78
    %v95 = vcvt.s32.f32 %v79
    %v96 = vcvt.s32.f32 %v80
    %v97 = vcvt.s32.f32 %v81
    %v98 = vcvt.s32.f32 %v82
    %v99 = vcvt.s32.f32 %v83
    %v100 = vld [vmem:[#allocation3] sm:$0xff]
    %v101 = vld [vmem:[#allocation3 + $0x8] sm:$0xff]
    %vm102 = vcmask 130048
    %v104 = vsel %vm102, %v84, 0
    %v107 = vsel %vm102, %v85, 0
    %v110 = vsel %vm102, %v86, 0
    %v113 = vsel %vm102, %v87, 0
    %v116 = vsel %vm102, %v88, 0
    %v119 = vsel %vm102, %v89, 0
    %v122 = vsel %vm102, %v90, 0
    %v125 = vsel %vm102, %v91, 0
    %v128 = vsel %vm102, %v92, 0
    %v131 = vsel %vm102, %v93, 0
    %v134 = vsel %vm102, %v94, 0
    %v137 = vsel %vm102, %v95, 0
    %v140 = vsel %vm102, %v96, 0
    %v143 = vsel %vm102, %v97, 0
    %v146 = vsel %vm102, %v98, 0
    %v149 = vsel %vm102, %v99, 0
    %151 = vmatprep.subr.mxu0 0.0
    %152 = vmatpush1.msra.mxu0 %v100
    %153 = vmatprep.subr.mxu0 0.0
    %154 = vmatpush1.msra.mxu0 %v101
    %155 = vmatprep.subr.mxu0 0.0
    %156 = vmatpush1.msra.mxu0 0.0
    %157 = vmatprep.subr.mxu0 0.0
    %158 = vmatpush1.msra.mxu0 0.0
    %159 = vmatprep.subr.mxu0 0.0
    %160 = vmatpush1.msra.mxu0 0.0
    %161 = vmatprep.subr.mxu0 0.0
    %162 = vmatpush1.msra.mxu0 0.0
    %163 = vmatprep.subr.mxu0 0.0
    %164 = vmatpush1.msra.mxu0 0.0
    %165 = vmatprep.subr.mxu0 0.0
    %166 = vmatpush1.msra.mxu0 0.0
    %167 = vmatprep.subr.mxu0 0.0
    %168 = vmatpush1.msra.mxu0 0.0
    %169 = vmatprep.subr.mxu0 0.0
    %170 = vmatpush1.msra.mxu0 0.0
    %171 = vmatprep.subr.mxu0 0.0
    %172 = vmatpush1.msra.mxu0 0.0
    %173 = vmatprep.subr.mxu0 0.0
    %174 = vmatpush1.msra.mxu0 0.0
    %175 = vmatprep.subr.mxu0 0.0
    %176 = vmatpush1.msra.mxu0 0.0
    %177 = vmatprep.subr.mxu0 0.0
    %178 = vmatpush1.msra.mxu0 0.0
    %179 = vmatprep.subr.mxu0 0.0
    %180 = vmatpush1.msra.mxu0 0.0
    %181 = vmatprep.subr.mxu0 0.0
    %182 = vmatpush1.msra.mxu0 0.0
    %183 = vmatprep.subr.mxu0 0.0
    %184 = vmatpush1.msra.mxu0 0.0
    %185 = vmatprep.subr.mxu0 0.0
    %186 = vmatpush1.msra.mxu0 0.0
    %187 = vmatprep.subr.mxu0 0.0
    %188 = vmatpush1.msra.mxu0 0.0
    %189 = vmatprep.subr.mxu0 0.0
    %190 = vmatpush1.msra.mxu0 0.0
    %191 = vmatprep.subr.mxu0 0.0
    %192 = vmatpush1.msra.mxu0 0.0
    %193 = vmatprep.subr.mxu0 0.0
    %194 = vmatpush1.msra.mxu0 0.0
    %195 = vmatprep.subr.mxu0 0.0
    %196 = vmatpush1.msra.mxu0 0.0
    %197 = vmatprep.subr.mxu0 0.0
    %198 = vmatpush1.msra.mxu0 0.0
    %199 = vmatprep.subr.mxu0 0.0
    %200 = vmatpush1.msra.mxu0 0.0
    %201 = vmatprep.subr.mxu0 0.0
    %202 = vmatpush1.msra.mxu0 0.0
    %203 = vmatprep.subr.mxu0 0.0
    %204 = vmatpush1.msra.mxu0 0.0
    %205 = vmatprep.subr.mxu0 0.0
    %206 = vmatpush1.msra.mxu0 0.0
    %207 = vmatprep.subr.mxu0 0.0
    %208 = vmatpush1.msra.mxu0 0.0
    %209 = vmatprep.subr.mxu0 0.0
    %210 = vmatpush1.msra.mxu0 0.0
    %211 = vmatprep.subr.mxu0 0.0
    %212 = vmatpush1.msra.mxu0 0.0
    %213 = vmatprep.subr.mxu0 0.0
    %214 = vmatpush1.msra.mxu0 0.0
    %215 = vmatprep.mubr.f32.mxu0 0.0
    %216 = vmatmul.mubr.f32.gmra.mrb[0].mxu0 %v104
    %v217 = vpop.f32.mrb[0].mxu0
    %v218 = vadd.f32 0.0, %v217
    %v219 = vpop.f32.mrb[0].mxu0
    %220 = vmatprep.mubr.f32.mxu0 0.0
    %221 = vmatmul.mubr.f32.gmra.mrb[0].mxu0 %v107
    %v222 = vpop.f32.mrb[0].mxu0
    %v223 = vadd.f32 0.0, %v222
    %v224 = vpop.f32.mrb[0].mxu0
    %225 = vmatprep.mubr.f32.mxu0 0.0
    %226 = vmatmul.mubr.f32.gmra.mrb[0].mxu0 %v110
    %v227 = vpop.f32.mrb[0].mxu0
    %v228 = vadd.f32 0.0, %v227
    %v229 = vpop.f32.mrb[0].mxu0
    %230 = vmatprep.mubr.f32.mxu0 0.0
    %231 = vmatmul.mubr.f32.gmra.mrb[0].mxu0 %v113
    %v232 = vpop.f32.mrb[0].mxu0
    %v233 = vadd.f32 0.0, %v232
    %v234 = vpop.f32.mrb[0].mxu0
    %235 = vmatprep.mubr.f32.mxu0 0.0
    %236 = vmatmul.mubr.f32.gmra.mrb[0].mxu0 %v116
    %v237 = vpop.f32.mrb[0].mxu0
    %v238 = vadd.f32 0.0, %v237
    %v239 = vpop.f32.mrb[0].mxu0
    %240 = vmatprep.mubr.f32.mxu0 0.0
    %241 = vmatmul.mubr.f32.gmra.mrb[0].mxu0 %v119
    %v242 = vpop.f32.mrb[0].mxu0
    %v243 = vadd.f32 0.0, %v242
    %v244 = vpop.f32.mrb[0].mxu0
    %245 = vmatprep.mubr.f32.mxu0 0.0
    %246 = vmatmul.mubr.f32.gmra.mrb[0].mxu0 %v122
    %v247 = vpop.f32.mrb[0].mxu0
    %v248 = vadd.f32 0.0, %v247
    %v249 = vpop.f32.mrb[0].mxu0
    %250 = vmatprep.mubr.f32.mxu0 0.0
    %251 = vmatmul.mubr.f32.gmra.mrb[0].mxu0 %v125
    %v252 = vpop.f32.mrb[0].mxu0
    %v253 = vadd.f32 0.0, %v252
    %v254 = vpop.f32.mrb[0].mxu0
    %255 = vmatprep.mubr.f32.mxu0 0.0
    %256 = vmatmul.mubr.f32.gmra.mrb[0].mxu0 %v128
    %v257 = vpop.f32.mrb[0].mxu0
    %v258 = vadd.f32 0.0, %v257
    %v259 = vpop.f32.mrb[0].mxu0
    %260 = vmatprep.mubr.f32.mxu0 0.0
    %261 = vmatmul.mubr.f32.gmra.mrb[0].mxu0 %v131
    %v262 = vpop.f32.mrb[0].mxu0
    %v263 = vadd.f32 0.0, %v262
    %v264 = vpop.f32.mrb[0].mxu0
    %265 = vmatprep.mubr.f32.mxu0 0.0
    %266 = vmatmul.mubr.f32.gmra.mrb[0].mxu0 %v134
    %v267 = vpop.f32.mrb[0].mxu0
    %v268 = vadd.f32 0.0, %v267
    %v269 = vpop.f32.mrb[0].mxu0
    %270 = vmatprep.mubr.f32.mxu0 0.0
    %271 = vmatmul.mubr.f32.gmra.mrb[0].mxu0 %v137
    %v272 = vpop.f32.mrb[0].mxu0
    %v273 = vadd.f32 0.0, %v272
    %v274 = vpop.f32.mrb[0].mxu0
    %275 = vmatprep.mubr.f32.mxu0 0.0
    %276 = vmatmul.mubr.f32.gmra.mrb[0].mxu0 %v140
    %v277 = vpop.f32.mrb[0].mxu0
    %v278 = vadd.f32 0.0, %v277
    %v279 = vpop.f32.mrb[0].mxu0
    %280 = vmatprep.mubr.f32.mxu0 0.0
    %281 = vmatmul.mubr.f32.gmra.mrb[0].mxu0 %v143
    %v282 = vpop.f32.mrb[0].mxu0
    %v283 = vadd.f32 0.0, %v282
    %v284 = vpop.f32.mrb[0].mxu0
    %285 = vmatprep.mubr.f32.mxu0 0.0
    %286 = vmatmul.mubr.f32.gmra.mrb[0].mxu0 %v146
    %v287 = vpop.f32.mrb[0].mxu0
    %v288 = vadd.f32 0.0, %v287
    %v289 = vpop.f32.mrb[0].mxu0
    %290 = vmatprep.mubr.f32.mxu0 0.0
    %291 = vmatmul.mubr.f32.gmra.mrb[0].mxu0 %v149
    %v292 = vpop.f32.mrb[0].mxu0
    %v293 = vadd.f32 0.0, %v292
    %v294 = vpop.f32.mrb[0].mxu0
    %295 = vdwg.mxu0
    %s296 = sld [smem:[#allocation2]]
    %s297 = smul.f32 %s296, 14.285714
    %v298 = vmul.f32 %v218, %v218
    %v299 = vmul.f32 %v223, %v223
    %v300 = vmul.f32 %v228, %v228
    %v301 = vmul.f32 %v233, %v233
    %v302 = vmul.f32 %v238, %v238
    %v303 = vmul.f32 %v243, %v243
    %v304 = vmul.f32 %v248, %v248
    %v305 = vmul.f32 %v253, %v253
    %v306 = vmul.f32 %v258, %v258
    %v307 = vmul.f32 %v263, %v263
    %v308 = vmul.f32 %v268, %v268
    %v309 = vmul.f32 %v273, %v273
    %v310 = vmul.f32 %v278, %v278
    %v311 = vmul.f32 %v283, %v283
    %v312 = vmul.f32 %v288, %v288
    %v313 = vmul.f32 %v293, %v293
    %vm314 = vcmask 261120
    %v315 = vsel %vm314, %v298, 0.0
    %316 = vadd.xlane.f32.xlu0 %v315
    %v317 = vpop.xlane.xlu0 %316
    %v318 = vsel %vm314, %v299, 0.0
    %319 = vadd.xlane.f32.xlu0 %v318
    %v320 = vpop.xlane.xlu0 %319
    %v321 = vsel %vm314, %v300, 0.0
    %322 = vadd.xlane.f32.xlu0 %v321
    %v323 = vpop.xlane.xlu0 %322
    %v324 = vsel %vm314, %v301, 0.0
    %325 = vadd.xlane.f32.xlu0 %v324
    %v326 = vpop.xlane.xlu0 %325
    %v327 = vsel %vm314, %v302, 0.0
    %328 = vadd.xlane.f32.xlu0 %v327
    %v329 = vpop.xlane.xlu0 %328
    %v330 = vsel %vm314, %v303, 0.0
    %331 = vadd.xlane.f32.xlu0 %v330
    %v332 = vpop.xlane.xlu0 %331
    %v333 = vsel %vm314, %v304, 0.0
    %334 = vadd.xlane.f32.xlu0 %v333
    %v335 = vpop.xlane.xlu0 %334
    %v336 = vsel %vm314, %v305, 0.0
    %337 = vadd.xlane.f32.xlu0 %v336
    %v338 = vpop.xlane.xlu0 %337
    %v339 = vsel %vm314, %v306, 0.0
    %340 = vadd.xlane.f32.xlu0 %v339
    %v341 = vpop.xlane.xlu0 %340
    %v342 = vsel %vm314, %v307, 0.0
    %343 = vadd.xlane.f32.xlu0 %v342
    %v344 = vpop.xlane.xlu0 %343
    %v345 = vsel %vm314, %v308, 0.0
    %346 = vadd.xlane.f32.xlu0 %v345
    %v347 = vpop.xlane.xlu0 %346
    %v348 = vsel %vm314, %v309, 0.0
    %349 = vadd.xlane.f32.xlu0 %v348
    %v350 = vpop.xlane.xlu0 %349
    %v351 = vsel %vm314, %v310, 0.0
    %352 = vadd.xlane.f32.xlu0 %v351
    %v353 = vpop.xlane.xlu0 %352
    %v354 = vsel %vm314, %v311, 0.0
    %355 = vadd.xlane.f32.xlu0 %v354
    %v356 = vpop.xlane.xlu0 %355
    %v357 = vsel %vm314, %v312, 0.0
    %358 = vadd.xlane.f32.xlu0 %v357
    %v359 = vpop.xlane.xlu0 %358
    %v360 = vsel %vm314, %v313, 0.0
    %361 = vadd.xlane.f32.xlu0 %v360
    %v362 = vpop.xlane.xlu0 %361
    %v363 = vmax.f32 %v317, 1e-24
    %v364 = vmax.f32 %v320, 1e-24
    %v365 = vmax.f32 %v323, 1e-24
    %v366 = vmax.f32 %v326, 1e-24
    %v367 = vmax.f32 %v329, 1e-24
    %v368 = vmax.f32 %v332, 1e-24
    %v369 = vmax.f32 %v335, 1e-24
    %v370 = vmax.f32 %v338, 1e-24
    %v371 = vmax.f32 %v341, 1e-24
    %v372 = vmax.f32 %v344, 1e-24
    %v373 = vmax.f32 %v347, 1e-24
    %v374 = vmax.f32 %v350, 1e-24
    %v375 = vmax.f32 %v353, 1e-24
    %v376 = vmax.f32 %v356, 1e-24
    %v377 = vmax.f32 %v359, 1e-24
    %v378 = vmax.f32 %v362, 1e-24
    %v379 = vrsqrt.pop %v363
    %v380 = vrsqrt.pop %v364
    %v381 = vrsqrt.pop %v365
    %v382 = vrsqrt.pop %v366
    %v383 = vrsqrt.pop %v367
    %v384 = vrsqrt.pop %v368
    %v385 = vrsqrt.pop %v369
    %v386 = vrsqrt.pop %v370
    %v387 = vrsqrt.pop %v371
    %v388 = vrsqrt.pop %v372
    %v389 = vrsqrt.pop %v373
    %v390 = vrsqrt.pop %v374
    %v391 = vrsqrt.pop %v375
    %v392 = vrsqrt.pop %v376
    %v393 = vrsqrt.pop %v377
    %v394 = vrsqrt.pop %v378
    %v395 = vstv %s297
    %v396 = vmul.f32 %v379, %v395
    %v397 = vmul.f32 %v380, %v395
    %v398 = vmul.f32 %v381, %v395
    %v399 = vmul.f32 %v382, %v395
    %v400 = vmul.f32 %v383, %v395
    %v401 = vmul.f32 %v384, %v395
    %v402 = vmul.f32 %v385, %v395
    %v403 = vmul.f32 %v386, %v395
    %v404 = vmul.f32 %v387, %v395
    %v405 = vmul.f32 %v388, %v395
    %v406 = vmul.f32 %v389, %v395
    %v407 = vmul.f32 %v390, %v395
    %v408 = vmul.f32 %v391, %v395
    %v409 = vmul.f32 %v392, %v395
    %v410 = vmul.f32 %v393, %v395
    %v411 = vmul.f32 %v394, %v395
    %v412 = vmul.f32 %v218, %v396
    %v413 = vmul.f32 %v223, %v397
    %v414 = vmul.f32 %v228, %v398
    %v415 = vmul.f32 %v233, %v399
    %v416 = vmul.f32 %v238, %v400
    %v417 = vmul.f32 %v243, %v401
    %v418 = vmul.f32 %v248, %v402
    %v419 = vmul.f32 %v253, %v403
    %v420 = vmul.f32 %v258, %v404
    %v421 = vmul.f32 %v263, %v405
    %v422 = vmul.f32 %v268, %v406
    %v423 = vmul.f32 %v273, %v407
    %v424 = vmul.f32 %v278, %v408
    %v425 = vmul.f32 %v283, %v409
    %v426 = vmul.f32 %v288, %v410
    %v427 = vmul.f32 %v293, %v411
    %428 = vxpose.xlu0.b32.start [1/16] %v412, 128
    %429 = vxpose.xlu0.b32.cont [2/16] %v413, 128
    %430 = vxpose.xlu0.b32.cont [3/16] %v414, 128
    %431 = vxpose.xlu0.b32.cont [4/16] %v415, 128
    %432 = vxpose.xlu0.b32.cont [5/16] %v416, 128
    %433 = vxpose.xlu0.b32.cont [6/16] %v417, 128
    %434 = vxpose.xlu0.b32.cont [7/16] %v418, 128
    %435 = vxpose.xlu0.b32.cont [8/16] %v419, 128
    %436 = vxpose.xlu0.b32.cont [9/16] %v420, 128
    %437 = vxpose.xlu0.b32.cont [10/16] %v421, 128
    %438 = vxpose.xlu0.b32.cont [11/16] %v422, 128
    %439 = vxpose.xlu0.b32.cont [12/16] %v423, 128
    %440 = vxpose.xlu0.b32.cont [13/16] %v424, 128
    %441 = vxpose.xlu0.b32.cont [14/16] %v425, 128
    %442 = vxpose.xlu0.b32.cont [15/16] %v426, 128
    %443 = vxpose.xlu0.b32.end [16/16] %v427, 128
    %v444 = vpop.trf.xlu0
    %v445 = vpop.trf.xlu0
    %v446 = vpop.trf.xlu0
    %v447 = vpop.trf.xlu0
    %v448 = vpop.trf.xlu0
    %v449 = vpop.trf.xlu0
    %v450 = vpop.trf.xlu0
    %v451 = vpop.trf.xlu0
    %v452 = vpop.trf.xlu0
    %v453 = vpop.trf.xlu0
    %v454 = vpop.trf.xlu0
    %v455 = vpop.trf.xlu0
    %v456 = vpop.trf.xlu0
    %v457 = vpop.trf.xlu0
    %v458 = vpop.trf.xlu0
    %v459 = vpop.trf.xlu0
    %460 = vst [vmem:[#allocation6] sm:$0xff] %v444
    %461 = vst [vmem:[#allocation6 + $0x8] sm:$0xff] %v445
    %462 = vst [vmem:[#allocation6 + $0x10] sm:$0xff] %v446
    %463 = vst [vmem:[#allocation6 + $0x18] sm:$0xff] %v447
    // Predicated region
    $region18: #{tpu_custom_call.1} parent=1 // pred_check
      _
    $region19: #{tpu_custom_call.1} parent=1 // pred_check_branch
      %465 = sbr.rel (0) target = $region21
    $region20: #{tpu_custom_call.1} parent=1 // pred_region
      %s467 = ssub.s32 512, 512
      %468 = vsyncadd [#allocation5], %s467
      %s469 = sshll.u32 [#allocation6], 4
      %s470 = int_to_ptr.vmem [resolvable:$true] %s469
      %475 = dma.vmem_to_hbm [thread:$0]  %s470, 512, %s3, [#allocation5], 128, 128, 8
    $region21: #{tpu_custom_call.1} parent=1 // pred_fallthru
      _
    // Predicated region
    $region22: #{tpu_custom_call.1} parent=1 // pred_check
      _
    $region23: #{tpu_custom_call.1} parent=1 // pred_check_branch
      %477 = sbr.rel (0) target = $region25
    $region24: #{tpu_custom_call.1} parent=1 // pred_region
      %478 = dma.done [#allocation5], 512
    $region25: #{tpu_custom_call.1} parent=1 // pred_fallthru
      _
    %479 = vsyncpa [#allocation4], 1
    %480 = vsyncpa [#allocation5], 1

</llo_original>
